<compile_context>
chip_gen: v7x
topology: tpu7x:2x2x1
jax: 0.10.0
libtpu: 0.0.40
codegen_flags: <defaults>
</compile_context>

<pallas_src>
import jax
import jax.numpy as jnp
from jax.experimental import pallas as pl
from jax.experimental.pallas import tpu as pltpu


def _vmem_capacity_bytes() -> int:
    """Physical VMEM per TensorCore; falls back to the smallest (v7x, 64 MiB)."""
    try:
        return int(pltpu.get_tpu_info().vmem_capacity_bytes)
    except Exception:
        return 64 << 20


def _pick_tile(dim: int, unit: int, cap: int) -> int:
    """Largest tile <= cap that is a multiple of `unit` (or the full dim),
    minimizing edge-block waste (wasted MXU flops / HBM traffic)."""
    if dim <= unit:
        return dim                              # full-dim block (divisibility exception)
    best_t, best_waste = unit, (-dim) % unit
    t = 2 * unit
    while t <= cap:
        waste = (-dim) % t
        if waste < best_waste or (waste == best_waste and t > best_t):
            best_t, best_waste = t, waste
        t += unit
    if dim <= cap and best_waste > 0:           # whole dim as one block: zero waste
        best_t = dim
    return best_t


def _footprint_bytes(tm: int, tn: int, tk: int, in_item: int, out_item: int) -> int:
    """Double-buffered VMEM footprint of one grid step (+ f32 accumulator)."""
    x_blk = tm * tk * in_item
    w_blk = tn * tk * in_item
    b_blk = 8 * tn * in_item                    # (1, tn) block pads to 8 sublanes
    o_blk = tm * tn * out_item
    return 2 * (x_blk + w_blk + b_blk + o_blk) + tm * tn * 4


def _make_kernel(nk: int, rem: int, use_bf16: bool):
    def kernel(x_ref, w_ref, b_ref, o_ref, acc_ref):
        k = pl.program_id(2)

        @pl.when(k == 0)
        def _init():
            acc_ref[...] = jnp.zeros_like(acc_ref)

        x_blk = x_ref[...]
        w_blk = w_ref[...]
        if rem:
            # D_in is not a multiple of tk and the inputs are NOT padded in HBM:
            # the last K block reads undefined data past D_in.  Zero it out so it
            # cannot contaminate valid outputs (garbage could be NaN/Inf).
            col = jax.lax.broadcasted_iota(jnp.int32, (1, x_blk.shape[-1]), 1)
            keep = jnp.logical_or(k < nk - 1, col < rem)
            x_blk = jnp.where(keep, x_blk, 0.0)
            w_blk = jnp.where(keep, w_blk, 0.0)
        if use_bf16:
            # bf16 MXU inputs (f32 accumulate): ~3x MXU throughput on v6e/v7x.
            x_blk = x_blk.astype(jnp.bfloat16)
            w_blk = w_blk.astype(jnp.bfloat16)

        # x @ W^T without any host/HBM transpose: contract both last dims (MXU-native).
        acc_ref[...] += jax.lax.dot_general(
            x_blk, w_blk,
            dimension_numbers=(((1,), (1,)), ((), ())),
            preferred_element_type=jnp.float32,
        )

        @pl.when(k == nk - 1)
        def _finalize():
            z = acc_ref[...] + b_ref[...].astype(jnp.float32)
            # EUP-friendly sigmoid: exp and approx reciprocal both land on the
            # EUP slot (free relative to a VPU divide).
            y = pl.reciprocal(1.0 + jnp.exp(-z), approx=True)
            o_ref[...] = y.astype(o_ref.dtype)

    return kernel


def modal_attention_network(x, weight, bias, *, use_bf16_matmul: bool = False,
                            tm_cap: int = 256, tn_cap: int = 512, tk_cap=None):
    """Forward pass of modal_attention_network: sigmoid(x @ weight.T + bias).

    x: (B, D_in), weight: (D_out, D_in), bias: (D_out,). Returns (B, D_out).
    """
    B, D_in = x.shape
    D_out, D_in_w = weight.shape
    assert D_in_w == D_in and bias.shape == (D_out,)

    in_item = jnp.dtype(x.dtype).itemsize
    out_item = in_item

    # Generation-aware VMEM budget (v5e/v6e: 128 MiB, v7x: 64 MiB per TensorCore).
    cap_bytes = _vmem_capacity_bytes()
    budget = int(0.65 * cap_bytes)

    # Tight tiles: multiples of 8 / 128 (or the full dim) that minimize padding.
    tm = _pick_tile(B, 8, tm_cap)
    tn = _pick_tile(D_out, 128, tn_cap)

    # K tile: full D_in when the double-buffered footprint fits the budget,
    # otherwise K-tiling in multiples of 128 (bounds VMEM independent of D_in).
    full_ok = (tk_cap is None or D_in <= tk_cap) and \
        _footprint_bytes(tm, tn, D_in, in_item, out_item) <= budget
    if D_in <= 128 or full_ok:
        tk = D_in
    else:
        limit_k = min(D_in, tk_cap) if tk_cap is not None else D_in
        tk, t = 128, 256
        while t <= limit_k and _footprint_bytes(tm, tn, t, in_item, out_item) <= budget:
            tk, t = t, t + 128

    ni, nj, nk = pl.cdiv(B, tm), pl.cdiv(D_out, tn), pl.cdiv(D_in, tk)
    rem = D_in % tk                          # ragged last K block (0 when tk == D_in)

    # Grid order: keep the operand that is cheaper to re-stream as the inner
    # sweep (the other stays VMEM-resident when nk == 1).  Megacore-aware
    # tie-break: put an axis with >= 2 tiles outermost when it costs little.
    x_bytes = B * D_in * in_item
    w_bytes = D_out * D_in * in_item
    if nk == 1:
        cost_ji = nj * x_bytes + w_bytes     # j outer: W resident, x restreamed nj times
        cost_ij = x_bytes + ni * w_bytes     # i outer: x resident, W restreamed ni times
        if cost_ij < cost_ji:
            order = "ij"
        elif cost_ji < cost_ij:
            order = "ji"
        else:
            order = "ij" if ni >= nj else "ji"
        if order == "ji" and nj == 1 and ni >= 2 and cost_ij <= 1.25 * cost_ji:
            order = "ij"
        elif order == "ij" and ni == 1 and nj >= 2 and cost_ji <= 1.25 * cost_ij:
            order = "ji"
    else:
        order = "ij" if ni >= nj else "ji"   # traffic is order-independent with K-tiling

    if order == "ji":
        grid = (nj, ni, nk)
        x_map = lambda j, i, k: (i, k)
        w_map = lambda j, i, k: (j, k)
        b_map = lambda j, i, k: (0, j)
        o_map = lambda j, i, k: (i, j)
    else:
        grid = (ni, nj, nk)
        x_map = lambda i, j, k: (i, k)
        w_map = lambda i, j, k: (j, k)
        b_map = lambda i, j, k: (0, j)
        o_map = lambda i, j, k: (i, j)

    grid_spec = pltpu.PrefetchScalarGridSpec(
        num_scalar_prefetch=0,
        grid=grid,
        in_specs=[
            pl.BlockSpec((tm, tk), x_map),   # x tile
            pl.BlockSpec((tn, tk), w_map),   # weight tile (kept as (D_out, D_in))
            pl.BlockSpec((1, tn), b_map),    # bias tile
        ],
        out_specs=pl.BlockSpec((tm, tn), o_map),
        scratch_shapes=[pltpu.VMEM((tm, tn), jnp.float32)],
    )

    # Explicit scoped-VMEM limit derived from the real footprint (+ headroom).
    fp = _footprint_bytes(tm, tn, tk, in_item, out_item)
    vmem_limit = int(min(cap_bytes, max(fp + (4 << 20), 16 << 20)))

    # HBM traffic for the actual re-read pattern (advisory for XLA scheduling).
    if nk == 1:
        if order == "ji":
            x_rd, w_rd = nj * ni * tm * tk, nj * tn * tk
        else:
            x_rd, w_rd = ni * tm * tk, ni * nj * tn * tk
    else:
        x_rd, w_rd = ni * nj * nk * tm * tk, ni * nj * nk * tn * tk
    bytes_accessed = int(in_item * (x_rd + w_rd + nj * tn) + out_item * B * D_out)

    out = pl.pallas_call(
        _make_kernel(nk, rem, use_bf16_matmul),
        out_shape=jax.ShapeDtypeStruct((B, D_out), x.dtype),
        grid_spec=grid_spec,
        compiler_params=pltpu.CompilerParams(
            dimension_semantics=("parallel", "parallel", "arbitrary"),
            vmem_limit_bytes=vmem_limit,
        ),
        cost_estimate=pl.CostEstimate(
            flops=2 * B * D_in * D_out,
            transcendentals=B * D_out,           # sigmoid
            bytes_accessed=bytes_accessed,
        ),
    )(x, weight, bias.reshape(1, D_out))

    return out


if __name__ == "__main__":
    def reference(x, w, b):
        return jax.nn.sigmoid(x @ w.T + b)

    def run_case(B, D_in, D_out, seed, **kw):
        kx, kw_, kb = jax.random.split(jax.random.PRNGKey(seed), 3)
        bound = 1.0 / jnp.sqrt(jnp.float32(D_in))
        x = jax.random.normal(kx, (B, D_in), dtype=jnp.float32)
        w = jax.random.uniform(kw_, (D_out, D_in), minval=-bound, maxval=bound,
                               dtype=jnp.float32)
        b = jax.random.uniform(kb, (D_out,), minval=-bound, maxval=bound,
                               dtype=jnp.float32)
        out = jax.block_until_ready(modal_attention_network(x, w, b, **kw))
        ref = reference(x, w, b)
        assert out.shape == (B, D_out)
        assert jnp.allclose(out, ref, atol=2e-3, rtol=2e-3), \
            float(jnp.max(jnp.abs(out - ref)))
        return out

    # Small shapes consistent with the module: batch=8, input_dim=32, output_dim=32.
    run_case(8, 32, 32, seed=0)

    # Non-divisible shapes: exercises tight tile selection + Pallas edge blocks
    # (no host-side padding of x / weight).
    run_case(300, 192, 384, seed=1)

    # Forced K-tiling with a ragged reduction dim: exercises the accumulator
    # scratch and the last-K-step masking path.
    run_case(64, 400, 256, seed=2, tk_cap=128)

    # TODO(synk): the module's `dropout` constructor arg is unused in forward(); nothing to port.
    print("KERNEL_OK")
</pallas_src>

<mosaic_0001>
module attributes {stable_mosaic.version = 11 : i64} {
  func.func @kernel(%arg0: i32, %arg1: i32, %arg2: i32, %arg3: memref<8x32xf32, #tpu.memory_space<vmem>>, %arg4: memref<32x32xf32, #tpu.memory_space<vmem>>, %arg5: memref<1x32xf32, #tpu.memory_space<vmem>>, %arg6: memref<8x32xf32, #tpu.memory_space<vmem>>, %arg7: memref<8x32xf32, #tpu.memory_space<vmem>>) attributes {dimension_semantics = [#tpu.dimension_semantics<parallel>, #tpu.dimension_semantics<parallel>, #tpu.dimension_semantics<arbitrary>], iteration_bounds = array<i64: 1, 1, 1>, scalar_prefetch = 0 : i64, scratch_operands = 1 : i64, tpu.core_type = #tpu.core_type<tc>, window_params = [{transform_indices = @transform_0, window_bounds = array<i64: 8, 32>}, {transform_indices = @transform_1, window_bounds = array<i64: 32, 32>}, {transform_indices = @transform_2, window_bounds = array<i64: 1, 32>}, {transform_indices = @transform_3, window_bounds = array<i64: 8, 32>}]} {
    %c0_i32 = arith.constant 0 : i32
    %0 = arith.cmpi eq, %arg2, %c0_i32 : i32
    %1 = arith.extui %0 : i1 to i32
    %c0_i32_0 = arith.constant 0 : i32
    %2 = arith.cmpi ne, %1, %c0_i32_0 : i32
    scf.if %2 {
      %cst_10 = arith.constant 0.000000e+00 : f32
      %12 = vector.broadcast %cst_10 : f32 to vector<8x32xf32>
      %c0_11 = arith.constant 0 : index
      %c0_12 = arith.constant 0 : index
      %13 = vector.load %arg7[%c0_11, %c0_12] : memref<8x32xf32, #tpu.memory_space<vmem>>, vector<8x32xf32>
      tpu.vector_store %arg7[%c0_11, %c0_12], %12 {strides = array<i32>} : memref<8x32xf32, #tpu.memory_space<vmem>>, vector<8x32xf32>,
    } else {
    }
    %c0 = arith.constant 0 : index
    %c0_1 = arith.constant 0 : index
    %3 = vector.load %arg3[%c0, %c0_1] : memref<8x32xf32, #tpu.memory_space<vmem>>, vector<8x32xf32>
    %c0_2 = arith.constant 0 : index
    %c0_3 = arith.constant 0 : index
    %4 = vector.load %arg4[%c0_2, %c0_3] : memref<32x32xf32, #tpu.memory_space<vmem>>, vector<32x32xf32>
    %c0_4 = arith.constant 0 : index
    %c0_5 = arith.constant 0 : index
    %5 = vector.load %arg7[%c0_4, %c0_5] : memref<8x32xf32, #tpu.memory_space<vmem>>, vector<8x32xf32>
    %cst = arith.constant dense<0.000000e+00> : vector<8x32xf32>
    %6 = tpu.matmul %3, %4, %cst {dimension_numbers = #tpu.dot_dimension_numbers<[1], [1], [0], [0], [0, 0, 1, 0], [], []>} : vector<8x32xf32>, vector<32x32xf32>, vector<8x32xf32> -> vector<8x32xf32>
    %7 = arith.addf %5, %6 : vector<8x32xf32>
    %c0_6 = arith.constant 0 : index
    %c0_7 = arith.constant 0 : index
    %8 = vector.load %arg7[%c0_6, %c0_7] : memref<8x32xf32, #tpu.memory_space<vmem>>, vector<8x32xf32>
    tpu.vector_store %arg7[%c0_6, %c0_7], %7 {strides = array<i32>} : memref<8x32xf32, #tpu.memory_space<vmem>>, vector<8x32xf32>,
    %c0_i32_8 = arith.constant 0 : i32
    %9 = arith.cmpi eq, %arg2, %c0_i32_8 : i32
    %10 = arith.extui %9 : i1 to i32
    %c0_i32_9 = arith.constant 0 : i32
    %11 = arith.cmpi ne, %10, %c0_i32_9 : i32
    scf.if %11 {
      %c0_10 = arith.constant 0 : index
      %c0_11 = arith.constant 0 : index
      %12 = vector.load %arg7[%c0_10, %c0_11] : memref<8x32xf32, #tpu.memory_space<vmem>>, vector<8x32xf32>
      %c0_12 = arith.constant 0 : index
      %c0_13 = arith.constant 0 : index
      %13 = vector.load %arg5[%c0_12, %c0_13] : memref<1x32xf32, #tpu.memory_space<vmem>>, vector<1x32xf32>
      %14 = vector.broadcast %13 : vector<1x32xf32> to vector<8x32xf32>
      %15 = arith.addf %12, %14 : vector<8x32xf32>
      %cst_14 = arith.constant 0.000000e+00 : f32
      %16 = vector.broadcast %cst_14 : f32 to vector<8x32xf32>
      %17 = arith.subf %16, %15 : vector<8x32xf32>
      %18 = math.exp %17 : vector<8x32xf32>
      %cst_15 = arith.constant 1.000000e+00 : f32
      %19 = vector.broadcast %cst_15 : f32 to vector<8x32xf32>
      %20 = arith.addf %19, %18 : vector<8x32xf32>
      %21 = tpu.reciprocal %20 {approx = true} : vector<8x32xf32> -> vector<8x32xf32>
      %c0_16 = arith.constant 0 : index
      %c0_17 = arith.constant 0 : index
      %22 = vector.load %arg6[%c0_16, %c0_17] : memref<8x32xf32, #tpu.memory_space<vmem>>, vector<8x32xf32>
      tpu.vector_store %arg6[%c0_16, %c0_17], %21 {strides = array<i32>} : memref<8x32xf32, #tpu.memory_space<vmem>>, vector<8x32xf32>,
    } else {
    }
    return
  }
  func.func @transform_0(%arg0: i32, %arg1: i32, %arg2: i32) -> (i32, i32) {
    %c0_i32 = arith.constant 0 : i32
    return %arg0, %arg2 : i32, i32
  }
  func.func @transform_1(%arg0: i32, %arg1: i32, %arg2: i32) -> (i32, i32) {
    %c0_i32 = arith.constant 0 : i32
    return %arg1, %arg2 : i32, i32
  }
  func.func @transform_2(%arg0: i32, %arg1: i32, %arg2: i32) -> (i32, i32) {
    %c0_i32 = arith.constant 0 : i32
    %c0_i32_0 = arith.constant 0 : i32
    return %c0_i32, %arg1 : i32, i32
  }
  func.func @transform_3(%arg0: i32, %arg1: i32, %arg2: i32) -> (i32, i32) {
    %c0_i32 = arith.constant 0 : i32
    return %arg0, %arg1 : i32, i32
  }
}

</mosaic_0001>

<llo_original>
// kernel: tpu_custom_call.1
$region0: #{tpu_custom_call.1}
  #allocation0 [shape = 'u32[]', space=smem, size = 0x4, offset = 0x4, fixed_abs, tag = 'smem constant byte address 0x4 - core index']
  #allocation1 [shape = 'u32[144,128]{1,0:T(1,128)}', space=vmem, size = 0x12000, scoped, tag = 'internal scratch']
  #allocation2 [shape = 'f32[8,32]{1,0:T(8,128)}', space=vmem, size = 0x1000, scoped, tag = 'scratch operand']
  %s0 = inlined_call_operand.hbm [shape: f32[8,32], index: 0, kind: input, shape index: {}]
  %s1 = inlined_call_operand.hbm [shape: f32[32,32], index: 1, kind: input, shape index: {}]
  %s2 = inlined_call_operand.vmem [shape: f32[1,32], index: 2, kind: input, shape index: {}]
  %s3 = inlined_call_operand.hbm [shape: f32[8,32], index: 3, kind: output, shape index: {}]
  %s4 = sld [smem:[#allocation0]]
  $region38: #{tpu_custom_call.1} parent=0
    _
  %s6 = ssub.s32 1, %s4
  %s7 = scalar_select 0, %s6, %s4
  $region1: #{tpu_custom_call.1} parent=0
    #allocation3 [shape = 'u8[4096]{0}', space=vmem, size = 0x1000, scoped, tag = 'input window, operand 0, single buffered']
    #allocation4 [shape = 's32[1]{0}', space=sflag, size = 0x4, scoped, tag = 'scoped memory for tpu_custom_call.1']
    #allocation5 [shape = 's32[1]{0}', space=sflag, size = 0x4, scoped, tag = 'scoped memory for tpu_custom_call.1']
    #allocation6 [shape = 'u8[16384]{0}', space=vmem, size = 0x4000, scoped, tag = 'input window, operand 1, single buffered']
    #allocation7 [shape = 's32[1]{0}', space=sflag, size = 0x4, scoped, tag = 'scoped memory for tpu_custom_call.1']
    #allocation8 [shape = 'u8[4096]{0}', space=vmem, size = 0x1000, scoped, tag = 'output window, operand 0, single buffered']
    %8 = vsyncpa [#allocation4], 0
    %9 = vsyncpa [#allocation7], 0
    %10 = vsyncpa [#allocation5], 0
    // Predicated region
    $region2: #{tpu_custom_call.1} parent=1 // pred_check
      _
    $region3: #{tpu_custom_call.1} parent=1 // pred_check_branch
      %12 = sbr.rel (0) target = $region5
    $region4: #{tpu_custom_call.1} parent=1 // pred_region
      %s14 = ssub.s32 128, 128
      %15 = vsyncadd [#allocation4], %s14
      %s17 = sshll.u32 [#allocation3], 4
      %s18 = int_to_ptr.vmem [resolvable:$true] %s17
      %20 = dma.hbm_to_vmem [thread:$0]  %s0, 128, %s18, [#allocation4]
    $region5: #{tpu_custom_call.1} parent=1 // pred_fallthru
      _
    // Predicated region
    $region6: #{tpu_custom_call.1} parent=1 // pred_check
      _
    $region7: #{tpu_custom_call.1} parent=1 // pred_check_branch
      %22 = sbr.rel (0) target = $region9
    $region8: #{tpu_custom_call.1} parent=1 // pred_region
      %s24 = ssub.s32 512, 512
      %25 = vsyncadd [#allocation7], %s24
      %s26 = sshll.u32 [#allocation6], 4
      %s27 = int_to_ptr.vmem [resolvable:$true] %s26
      %32 = dma.hbm_to_vmem [thread:$0]  %s1, 512, %s27, [#allocation7], 128, 128, 8
    $region9: #{tpu_custom_call.1} parent=1 // pred_fallthru
      _
    // Predicated region
    $region10: #{tpu_custom_call.1} parent=1 // pred_check
      _
    $region11: #{tpu_custom_call.1} parent=1 // pred_check_branch
      %34 = sbr.rel (0) target = $region13
    $region12: #{tpu_custom_call.1} parent=1 // pred_region
      _
    $region13: #{tpu_custom_call.1} parent=1 // pred_fallthru
      _
    // Predicated region
    $region14: #{tpu_custom_call.1} parent=1 // pred_check
      _
    $region15: #{tpu_custom_call.1} parent=1 // pred_check_branch
      %36 = sbr.rel (0) target = $region17
    $region16: #{tpu_custom_call.1} parent=1 // pred_region
      %37 = dma.done [#allocation4], 128
    $region17: #{tpu_custom_call.1} parent=1 // pred_fallthru
      _
    // Predicated region
    $region18: #{tpu_custom_call.1} parent=1 // pred_check
      _
    $region19: #{tpu_custom_call.1} parent=1 // pred_check_branch
      %39 = sbr.rel (0) target = $region21
    $region20: #{tpu_custom_call.1} parent=1 // pred_region
      %40 = dma.done [#allocation7], 512
    $region21: #{tpu_custom_call.1} parent=1 // pred_fallthru
      _
    %p41 = scmp.eq.s32.totalorder 0, 0
    // Predicated region
    $region22: #{tpu_custom_call.1} parent=1 // pred_check
      %p42 = pneg %p41
    $region23: #{tpu_custom_call.1} parent=1 // pred_check_branch
      %44 = sbr.rel (%p42) target = $region25
    $region24: #{tpu_custom_call.1} parent=1 // pred_region
      %vm45 = vcmask 261120
      %46 = vst.msk [vmem:[#allocation2] sm:$0xff] %vm45, 0.0
    $region25: #{tpu_custom_call.1} parent=1 // pred_fallthru
      _
    %v47 = vld [vmem:[#allocation3] sm:$0xff]
    %v48 = vld [vmem:[#allocation6] sm:$0xff]
    %v49 = vld [vmem:[#allocation6 + $0x8] sm:$0xff]
    %v50 = vld [vmem:[#allocation6 + $0x10] sm:$0xff]
    %v51 = vld [vmem:[#allocation6 + $0x18] sm:$0xff]
    %v52 = vld [vmem:[#allocation2] sm:$0xff]
    %vm53 = vcmask 261120
    %v55 = vsel %vm53, %v47, 0
    %v58 = vsel %vm53, %v48, 0
    %v61 = vsel %vm53, %v49, 0
    %v64 = vsel %vm53, %v50, 0
    %v67 = vsel %vm53, %v51, 0
    %69 = vmatprep.subr.mxu0 0.0
    %70 = vmatpush1.xpose.msra.mxu0 %v58
    %71 = vmatprep.subr.mxu0 0.0
    %72 = vmatpush1.xpose.msra.mxu0 %v61
    %73 = vmatprep.subr.mxu0 0.0
    %74 = vmatpush1.xpose.msra.mxu0 %v64
    %75 = vmatprep.subr.mxu0 0.0
    %76 = vmatpush1.xpose.msra.mxu0 %v67
    %77 = vmatprep.subr.mxu0 0.0
    %78 = vmatpush1.xpose.msra.mxu0 0.0
    %79 = vmatprep.subr.mxu0 0.0
    %80 = vmatpush1.xpose.msra.mxu0 0.0
    %81 = vmatprep.subr.mxu0 0.0
    %82 = vmatpush1.xpose.msra.mxu0 0.0
    %83 = vmatprep.subr.mxu0 0.0
    %84 = vmatpush1.xpose.msra.mxu0 0.0
    %85 = vmatprep.subr.mxu0 0.0
    %86 = vmatpush1.xpose.msra.mxu0 0.0
    %87 = vmatprep.subr.mxu0 0.0
    %88 = vmatpush1.xpose.msra.mxu0 0.0
    %89 = vmatprep.subr.mxu0 0.0
    %90 = vmatpush1.xpose.msra.mxu0 0.0
    %91 = vmatprep.subr.mxu0 0.0
    %92 = vmatpush1.xpose.msra.mxu0 0.0
    %93 = vmatprep.subr.mxu0 0.0
    %94 = vmatpush1.xpose.msra.mxu0 0.0
    %95 = vmatprep.subr.mxu0 0.0
    %96 = vmatpush1.xpose.msra.mxu0 0.0
    %97 = vmatprep.subr.mxu0 0.0
    %98 = vmatpush1.xpose.msra.mxu0 0.0
    %99 = vmatprep.subr.mxu0 0.0
    %100 = vmatpush1.xpose.msra.mxu0 0.0
    %101 = vmatprep.subr.mxu0 0.0
    %102 = vmatpush1.xpose.msra.mxu0 0.0
    %103 = vmatprep.subr.mxu0 0.0
    %104 = vmatpush1.xpose.msra.mxu0 0.0
    %105 = vmatprep.subr.mxu0 0.0
    %106 = vmatpush1.xpose.msra.mxu0 0.0
    %107 = vmatprep.subr.mxu0 0.0
    %108 = vmatpush1.xpose.msra.mxu0 0.0
    %109 = vmatprep.subr.mxu0 0.0
    %110 = vmatpush1.xpose.msra.mxu0 0.0
    %111 = vmatprep.subr.mxu0 0.0
    %112 = vmatpush1.xpose.msra.mxu0 0.0
    %113 = vmatprep.subr.mxu0 0.0
    %114 = vmatpush1.xpose.msra.mxu0 0.0
    %115 = vmatprep.subr.mxu0 0.0
    %116 = vmatpush1.xpose.msra.mxu0 0.0
    %117 = vmatprep.subr.mxu0 0.0
    %118 = vmatpush1.xpose.msra.mxu0 0.0
    %119 = vmatprep.subr.mxu0 0.0
    %120 = vmatpush1.xpose.msra.mxu0 0.0
    %121 = vmatprep.subr.mxu0 0.0
    %122 = vmatpush1.xpose.msra.mxu0 0.0
    %123 = vmatprep.subr.mxu0 0.0
    %124 = vmatpush1.xpose.msra.mxu0 0.0
    %125 = vmatprep.subr.mxu0 0.0
    %126 = vmatpush1.xpose.msra.mxu0 0.0
    %127 = vmatprep.subr.mxu0 0.0
    %128 = vmatpush1.xpose.msra.mxu0 0.0
    %129 = vmatprep.subr.mxu0 0.0
    %130 = vmatpush1.xpose.msra.mxu0 0.0
    %131 = vmatprep.subr.mxu0 0.0
    %132 = vmatpush1.xpose.msra.mxu0 0.0
    %133 = vmatprep.mubr.f32.mxu0 0.0
    %134 = vmatmul.mubr.f32.gmra.mrb[0].mxu0 %v55
    %v135 = vpop.f32.mrb[0].mxu0
    %v136 = vadd.f32 0.0, %v135
    %v137 = vpop.f32.mrb[0].mxu0
    %138 = vdwg.mxu0
    %v139 = vadd.f32 %v52, %v136
    %140 = vst.msk [vmem:[#allocation2] sm:$0xff] %vm53, %v139
    // Predicated region
    $region26: #{tpu_custom_call.1} parent=1 // pred_check
      %p141 = pneg %p41
    $region27: #{tpu_custom_call.1} parent=1 // pred_check_branch
      %143 = sbr.rel (%p141) target = $region29
    $region28: #{tpu_custom_call.1} parent=1 // pred_region
      %v144 = vld [vmem:[#allocation2] sm:$0xff]
      %v145 = vld [vmem:[%s2] sm:$0x1]
      %v147 = vlaneseq
      %v148 = vshrl.u32 %v147, 7
      %v149 = vsub.s32 0, %v148
      %v150 = vrot.slane %v145, %v149
      %v152 = vadd.f32 %v144, %v150
      %v153 = vsub.f32 0.0, %v152
      %v154 = vmul.f32 %v153, 1.442695
      %v155 = vpow.pop %v154
      %v156 = vadd.f32 %v155, 1.0
      %v157 = vrcp.pop %v156
      %158 = vst.msk [vmem:[#allocation8] sm:$0xff] %vm53, %v157
    $region29: #{tpu_custom_call.1} parent=1 // pred_fallthru
      _
    // Predicated region
    $region30: #{tpu_custom_call.1} parent=1 // pred_check
      _
    $region31: #{tpu_custom_call.1} parent=1 // pred_check_branch
      %160 = sbr.rel (0) target = $region33
    $region32: #{tpu_custom_call.1} parent=1 // pred_region
      %s162 = ssub.s32 128, 128
      %163 = vsyncadd [#allocation5], %s162
      %s165 = sshll.u32 [#allocation8], 4
      %s166 = int_to_ptr.vmem [resolvable:$true] %s165
      %168 = dma.vmem_to_hbm [thread:$0]  %s166, 128, %s3, [#allocation5]
    $region33: #{tpu_custom_call.1} parent=1 // pred_fallthru
      _
    // Predicated region
    $region34: #{tpu_custom_call.1} parent=1 // pred_check
      _
    $region35: #{tpu_custom_call.1} parent=1 // pred_check_branch
      %170 = sbr.rel (0) target = $region37
    $region36: #{tpu_custom_call.1} parent=1 // pred_region
      %171 = dma.done [#allocation5], 128
    $region37: #{tpu_custom_call.1} parent=1 // pred_fallthru
      _
    %172 = vsyncpa [#allocation4], 1
    %173 = vsyncpa [#allocation7], 1
    %174 = vsyncpa [#allocation5], 1

</llo_original>
